<compile_context>
chip_gen: v7x
topology: tpu7x:2x2x1
jax: 0.10.0
libtpu: 0.0.40
codegen_flags: <defaults>
</compile_context>

<pallas_src>
import jax
import jax.numpy as jnp
import numpy as np
from jax.experimental import pallas as pl
from jax.experimental.pallas import tpu as pltpu


# --------------------------------------------------------------------------
# Kernel
# --------------------------------------------------------------------------
def rope_kernel(cos_ref, sin_ref, x_ref, o_ref):
    # cos_ref / sin_ref: (TS, D) in table dtype (x's dtype).
    # x_ref / o_ref:     (TB, TS, D) blocks in x's dtype.
    x = x_ref[...].astype(jnp.float32)                   # (TB, TS, D)
    d = x.shape[-1]

    cos = cos_ref[...].astype(jnp.float32)               # (TS, D)
    ssin = sin_ref[...].astype(jnp.float32)              # (TS, D), signed

    # Swapped operand: x_swap[d] = x[d+1] for even d, x[d-1] for odd d.
    # Rolls are done on a 2-D view (leading dims merged; TS % 8 == 0 keeps the
    # reshape layout-free) so the lane rotate stays on the proven 2-D path.
    x2 = x.reshape(-1, d)
    x_next = pltpu.roll(x2, shift=d - 1, axis=1).reshape(x.shape)  # x[(k+1)%D]
    x_prev = pltpu.roll(x2, shift=1, axis=1).reshape(x.shape)      # x[(k-1)%D]
    lane = jax.lax.broadcasted_iota(jnp.int32, x.shape, dimension=2)
    x_swap = jnp.where((lane & 1) == 0, x_next, x_prev)
    # Wrap-around lanes of each roll are never selected (d=0 is even -> x_next,
    # d=D-1 is odd -> x_prev), so no extra masking is needed.

    out = x * cos[None] + x_swap * ssin[None]
    o_ref[...] = out.astype(o_ref.dtype)


# --------------------------------------------------------------------------
# Wrapper helpers
# --------------------------------------------------------------------------
def make_thetas(d_model, max_seq_len, dtype=jnp.float32):
    # Matches the PyTorch module exactly (base = max_seq_len, each theta
    # repeated twice).  NOTE: standard RoPE uses base 10000; the module spec
    # uses max_seq_len, so we keep that.
    i = jnp.arange(0, d_model // 2, dtype=dtype)
    base = jnp.power(jnp.asarray(max_seq_len, dtype), -(2.0 * i) / d_model)
    return jnp.repeat(base, 2)


def _round_up(x, m):
    return (x + m - 1) // m * m


def _vmem_capacity_bytes():
    try:
        return int(pltpu.get_tpu_info().vmem_capacity_bytes)
    except Exception:
        return 64 * (1 << 20)   # conservative (v7x-sized) fallback


def _choose_tiles(B, S, D, x_itemsize, tbl_itemsize, vmem_cap):
    """Pick (TS, TB, S_pad): TS multiple of 8, TB divides B."""
    MiB = 1 << 20
    big_vmem = vmem_cap >= 96 * MiB            # v5e / v6e (128 MiB); v7x is 64
    tbl_target = (4 if big_vmem else 2) * MiB  # per (TS, D) table block
    x_target = (8 if big_vmem else 2) * MiB    # per (TB, TS, D) x block (1 dir)

    # Sequence tile: multiple of 8, sized by the table-block target.
    ts_cap = max(8, (tbl_target // (D * tbl_itemsize)) // 8 * 8)
    TS = min(_round_up(S, 8), ts_cap)
    n_s = -(-S // TS)

    # Batch tile: largest divisor of B keeping the x block near target.
    row_bytes = TS * D * x_itemsize
    tb_cap = max(1, x_target // row_bytes)
    TB = max(c for c in range(1, B + 1) if B % c == 0 and c <= tb_cap)
    n_b = B // TB

    # v7x megacore: prefer an even number of parallel grid steps so the two
    # TensorCores split the work evenly.  Only adjust when it is cheap.
    if n_s * n_b > 1 and (n_s * n_b) % 2 == 1 and n_s > 1:
        ts_alt = max(8, _round_up(-(-S // (n_s + 1)), 8))
        if (-(-S // ts_alt)) % 2 == 0:
            TS = ts_alt
            n_s = -(-S // TS)

    S_pad = n_s * TS
    return TS, TB, S_pad


# --------------------------------------------------------------------------
# Public entry point
# --------------------------------------------------------------------------
def rotary_positional_embeddings(x, thetas):
    """x: (B, S, D) float array; thetas: (D,).  Returns rotated x, same shape.

    For a (B, S, H, head_dim) layout flatten heads into the last dim first
    (the pair-wise scheme never crosses pair boundaries) to keep the output
    lane-dense.
    """
    B, S, D = x.shape
    assert D % 2 == 0, "d_model must be even for interleaved RoPE"

    tbl_dtype = x.dtype                      # bf16 tables when x is bf16
    vmem_cap = _vmem_capacity_bytes()
    TS, TB, S_pad = _choose_tiles(
        B, S, D, x.dtype.itemsize, jnp.dtype(tbl_dtype).itemsize, vmem_cap)

    if S_pad != S:
        x = jnp.pad(x, ((0, 0), (0, S_pad - S), (0, 0)))

    # Precompute tables once in the wrapper (transcendentals are expensive;
    # S_pad*D evaluations total, not per grid step).
    indices = jnp.arange(S_pad, dtype=jnp.float32)
    freq = indices[:, None] * thetas.astype(jnp.float32)[None, :]   # (S_pad, D)
    cos_t = jnp.cos(freq)
    sin_t = jnp.sin(freq)
    lane = jnp.arange(D)
    signed_sin = jnp.where((lane % 2) == 0, -sin_t, sin_t)          # merged table
    cos_t = cos_t.astype(tbl_dtype)
    signed_sin = signed_sin.astype(tbl_dtype)

    grid = (S_pad // TS, B // TB)            # batch innermost: table block
                                             # index is constant -> reused.
    tbl_spec = pl.BlockSpec((TS, D), lambda s, b: (s, 0))
    x_spec = pl.BlockSpec((TB, TS, D), lambda s, b: (b, s, 0))

    # Generation-aware scoped-VMEM limit: ~48 MiB on v7x (64 MiB physical),
    # up to 96 MiB on v5e/v6e (128 MiB physical).
    vmem_limit = min(96 * (1 << 20), max(32 * (1 << 20), int(0.75 * vmem_cap)))

    out = pl.pallas_call(
        rope_kernel,
        out_shape=jax.ShapeDtypeStruct((B, S_pad, D), x.dtype),
        grid=grid,
        in_specs=[tbl_spec, tbl_spec, x_spec],
        out_specs=x_spec,
        compiler_params=pltpu.CompilerParams(
            dimension_semantics=("parallel", "parallel"),
            vmem_limit_bytes=vmem_limit,
        ),
    )(cos_t, signed_sin, x)

    return out[:, :S] if S_pad != S else out


# --------------------------------------------------------------------------
# Pure-JAX reference (mirrors the PyTorch forward exactly)
# --------------------------------------------------------------------------
def rope_reference(x, thetas):
    B, S, D = x.shape
    indices = jnp.arange(0, S, dtype=jnp.float32)
    freq = indices[:, None] * thetas[None, :]          # (S, D)
    cos_f = jnp.cos(freq)
    sin_f = jnp.sin(freq)
    x_cos = x * cos_f[None]
    xp = x.reshape(B, S, D // 2, 2)
    x_odd, x_even = xp[..., 0], xp[..., 1]
    x_shifted = jnp.concatenate(
        [-x_even[..., None], x_odd[..., None]], axis=-1
    ).reshape(B, S, D)
    return x_cos + x_shifted * sin_f[None]


if __name__ == "__main__":
    key = jax.random.PRNGKey(0)

    # --- primary check: small lane-dense f32 case -------------------------
    batch, seqlen, d_model, max_seq_len = 2, 8, 128, 64
    x = jax.random.normal(key, (batch, seqlen, d_model), dtype=jnp.float32)
    thetas = make_thetas(d_model, max_seq_len)

    out = rotary_positional_embeddings(x, thetas)
    out = jax.block_until_ready(out)
    ref = rope_reference(x, thetas)
    np.testing.assert_allclose(np.asarray(out), np.asarray(ref),
                               rtol=1e-5, atol=1e-5)

    # --- secondary check: bf16 input (bf16 tables) + padded sequence ------
    seqlen2 = 12                                   # not a multiple of 8 -> pad
    x2 = jax.random.normal(jax.random.PRNGKey(1),
                           (batch, seqlen2, d_model), dtype=jnp.float32)
    x2_bf = x2.astype(jnp.bfloat16)
    out2 = rotary_positional_embeddings(x2_bf, thetas)
    out2 = jax.block_until_ready(out2)
    ref2 = rope_reference(x2_bf.astype(jnp.float32), thetas)
    np.testing.assert_allclose(np.asarray(out2, dtype=np.float32),
                               np.asarray(ref2),
                               rtol=5e-2, atol=5e-2)

    print("KERNEL_OK")
</pallas_src>

<mosaic_0001>
module attributes {stable_mosaic.version = 11 : i64} {
  func.func @rope_kernel(%arg0: i32, %arg1: i32, %arg2: memref<8x128xf32, #tpu.memory_space<vmem>>, %arg3: memref<8x128xf32, #tpu.memory_space<vmem>>, %arg4: memref<2x8x128xf32, #tpu.memory_space<vmem>>, %arg5: memref<2x8x128xf32, #tpu.memory_space<vmem>>) attributes {dimension_semantics = [#tpu.dimension_semantics<parallel>, #tpu.dimension_semantics<parallel>], iteration_bounds = array<i64: 1, 1>, scalar_prefetch = 0 : i64, scratch_operands = 0 : i64, tpu.core_type = #tpu.core_type<tc>, window_params = [{transform_indices = @transform_0, window_bounds = array<i64: 8, 128>}, {transform_indices = @transform_1, window_bounds = array<i64: 8, 128>}, {transform_indices = @transform_2, window_bounds = array<i64: 2, 8, 128>}, {transform_indices = @transform_3, window_bounds = array<i64: 2, 8, 128>}]} {
    %c0 = arith.constant 0 : index
    %c0_0 = arith.constant 0 : index
    %c0_1 = arith.constant 0 : index
    %0 = vector.load %arg4[%c0, %c0_0, %c0_1] : memref<2x8x128xf32, #tpu.memory_space<vmem>>, vector<2x8x128xf32>
    %c0_2 = arith.constant 0 : index
    %c0_3 = arith.constant 0 : index
    %1 = vector.load %arg2[%c0_2, %c0_3] : memref<8x128xf32, #tpu.memory_space<vmem>>, vector<8x128xf32>
    %c0_4 = arith.constant 0 : index
    %c0_5 = arith.constant 0 : index
    %2 = vector.load %arg3[%c0_4, %c0_5] : memref<8x128xf32, #tpu.memory_space<vmem>>, vector<8x128xf32>
    %3 = vector.shape_cast %0 : vector<2x8x128xf32> to vector<16x128xf32>
    %c127_i32 = arith.constant 127 : i32
    %4 = tpu.dynamic_rotate %3 by %c127_i32 dim 1 : vector<16x128xf32>, i32 -> vector<16x128xf32>
    %5 = vector.shape_cast %4 : vector<16x128xf32> to vector<2x8x128xf32>
    %c1_i32 = arith.constant 1 : i32
    %6 = tpu.dynamic_rotate %3 by %c1_i32 dim 1 : vector<16x128xf32>, i32 -> vector<16x128xf32>
    %7 = vector.shape_cast %6 : vector<16x128xf32> to vector<2x8x128xf32>
    %8 = tpu.iota {dimensions = array<i32: 2>} : vector<2x8x128xi32>
    %c1_i32_6 = arith.constant 1 : i32
    %9 = vector.broadcast %c1_i32_6 : i32 to vector<2x8x128xi32>
    %10 = arith.andi %8, %9 : vector<2x8x128xi32>
    %c0_i32 = arith.constant 0 : i32
    %11 = vector.broadcast %c0_i32 : i32 to vector<2x8x128xi32>
    %12 = arith.cmpi eq, %10, %11 : vector<2x8x128xi32>
    %13 = arith.select %12, %5, %7 : vector<2x8x128xi1>, vector<2x8x128xf32>
    %14 = vector.shape_cast %1 : vector<8x128xf32> to vector<1x8x128xf32>
    %15 = vector.broadcast %14 : vector<1x8x128xf32> to vector<2x8x128xf32>
    %16 = arith.mulf %0, %15 : vector<2x8x128xf32>
    %17 = vector.shape_cast %2 : vector<8x128xf32> to vector<1x8x128xf32>
    %18 = vector.broadcast %17 : vector<1x8x128xf32> to vector<2x8x128xf32>
    %19 = arith.mulf %13, %18 : vector<2x8x128xf32>
    %20 = arith.addf %16, %19 : vector<2x8x128xf32>
    %c0_7 = arith.constant 0 : index
    %c0_8 = arith.constant 0 : index
    %c0_9 = arith.constant 0 : index
    %21 = vector.load %arg5[%c0_7, %c0_8, %c0_9] : memref<2x8x128xf32, #tpu.memory_space<vmem>>, vector<2x8x128xf32>
    tpu.vector_store %arg5[%c0_7, %c0_8, %c0_9], %20 {strides = array<i32>} : memref<2x8x128xf32, #tpu.memory_space<vmem>>, vector<2x8x128xf32>,
    return
  }
  func.func @transform_0(%arg0: i32, %arg1: i32) -> (i32, i32) {
    %c0_i32 = arith.constant 0 : i32
    %c0_i32_0 = arith.constant 0 : i32
    return %arg0, %c0_i32 : i32, i32
  }
  func.func @transform_1(%arg0: i32, %arg1: i32) -> (i32, i32) {
    %c0_i32 = arith.constant 0 : i32
    %c0_i32_0 = arith.constant 0 : i32
    return %arg0, %c0_i32 : i32, i32
  }
  func.func @transform_2(%arg0: i32, %arg1: i32) -> (i32, i32, i32) {
    %c0_i32 = arith.constant 0 : i32
    %c0_i32_0 = arith.constant 0 : i32
    return %arg1, %arg0, %c0_i32 : i32, i32, i32
  }
  func.func @transform_3(%arg0: i32, %arg1: i32) -> (i32, i32, i32) {
    %c0_i32 = arith.constant 0 : i32
    %c0_i32_0 = arith.constant 0 : i32
    return %arg1, %arg0, %c0_i32 : i32, i32, i32
  }
}

</mosaic_0001>

<llo_original>
// kernel: tpu_custom_call.1
$region0: #{tpu_custom_call.1}
  #allocation0 [shape = 'u32[]', space=smem, size = 0x4, offset = 0x4, fixed_abs, tag = 'smem constant byte address 0x4 - core index']
  #allocation1 [shape = 'u32[144,128]{1,0:T(1,128)}', space=vmem, size = 0x12000, scoped, tag = 'internal scratch']
  %s0 = inlined_call_operand.hbm [shape: f32[8,128], index: 0, kind: input, shape index: {}]
  %s1 = inlined_call_operand.hbm [shape: f32[8,128], index: 1, kind: input, shape index: {}]
  %s2 = inlined_call_operand.hbm [shape: f32[2,8,128], index: 2, kind: input, shape index: {}]
  %s3 = inlined_call_operand.hbm [shape: f32[2,8,128], index: 3, kind: output, shape index: {}]
  %s4 = sld [smem:[#allocation0]]
  $region34: #{tpu_custom_call.1} parent=0
    _
  %s6 = ssub.s32 1, %s4
  %s7 = scalar_select 0, %s6, %s4
  $region1: #{tpu_custom_call.1} parent=0
    #allocation2 [shape = 'u8[4096]{0}', space=vmem, size = 0x1000, scoped, tag = 'input window, operand 0, single buffered']
    #allocation3 [shape = 's32[1]{0}', space=sflag, size = 0x4, scoped, tag = 'scoped memory for tpu_custom_call.1']
    #allocation4 [shape = 's32[1]{0}', space=sflag, size = 0x4, scoped, tag = 'scoped memory for tpu_custom_call.1']
    #allocation5 [shape = 'u8[4096]{0}', space=vmem, size = 0x1000, scoped, tag = 'input window, operand 1, single buffered']
    #allocation6 [shape = 's32[1]{0}', space=sflag, size = 0x4, scoped, tag = 'scoped memory for tpu_custom_call.1']
    #allocation7 [shape = 'u8[8192]{0}', space=vmem, size = 0x2000, scoped, tag = 'input window, operand 2, single buffered']
    #allocation8 [shape = 'u8[8192]{0}', space=vmem, size = 0x2000, scoped, tag = 'output window, operand 0, single buffered']
    %8 = vsyncpa [#allocation3], 0
    %9 = vsyncpa [#allocation6], 0
    %10 = vsyncpa [#allocation4], 0
    // Predicated region
    $region2: #{tpu_custom_call.1} parent=1 // pred_check
      _
    $region3: #{tpu_custom_call.1} parent=1 // pred_check_branch
      %12 = sbr.rel (0) target = $region5
    $region4: #{tpu_custom_call.1} parent=1 // pred_region
      %s14 = ssub.s32 128, 128
      %15 = vsyncadd [#allocation3], %s14
      %s17 = sshll.u32 [#allocation2], 4
      %s18 = int_to_ptr.vmem [resolvable:$true] %s17
      %20 = dma.hbm_to_vmem [thread:$0]  %s0, 128, %s18, [#allocation3]
    $region5: #{tpu_custom_call.1} parent=1 // pred_fallthru
      _
    // Predicated region
    $region6: #{tpu_custom_call.1} parent=1 // pred_check
      _
    $region7: #{tpu_custom_call.1} parent=1 // pred_check_branch
      %22 = sbr.rel (0) target = $region9
    $region8: #{tpu_custom_call.1} parent=1 // pred_region
      %s24 = ssub.s32 128, 128
      %25 = vsyncadd [#allocation6], %s24
      %s27 = sshll.u32 [#allocation5], 4
      %s28 = int_to_ptr.vmem [resolvable:$true] %s27
      %30 = dma.hbm_to_vmem [thread:$0]  %s1, 128, %s28, [#allocation6]
    $region9: #{tpu_custom_call.1} parent=1 // pred_fallthru
      _
    // Predicated region
    $region10: #{tpu_custom_call.1} parent=1 // pred_check
      _
    $region11: #{tpu_custom_call.1} parent=1 // pred_check_branch
      %32 = sbr.rel (0) target = $region13
    $region12: #{tpu_custom_call.1} parent=1 // pred_region
      %s34 = ssub.s32 256, 256
      %35 = vsyncadd [#allocation6], %s34
      %s36 = sshll.u32 [#allocation7], 4
      %s37 = int_to_ptr.vmem [resolvable:$true] %s36
      %42 = dma.hbm_to_vmem [thread:$0]  %s2, 256, %s37, [#allocation6], 128, 128, 8
    $region13: #{tpu_custom_call.1} parent=1 // pred_fallthru
      _
    // Predicated region
    $region14: #{tpu_custom_call.1} parent=1 // pred_check
      _
    $region15: #{tpu_custom_call.1} parent=1 // pred_check_branch
      %44 = sbr.rel (0) target = $region17
    $region16: #{tpu_custom_call.1} parent=1 // pred_region
      %45 = dma.done [#allocation3], 128
    $region17: #{tpu_custom_call.1} parent=1 // pred_fallthru
      _
    // Predicated region
    $region18: #{tpu_custom_call.1} parent=1 // pred_check
      _
    $region19: #{tpu_custom_call.1} parent=1 // pred_check_branch
      %47 = sbr.rel (0) target = $region21
    $region20: #{tpu_custom_call.1} parent=1 // pred_region
      %48 = dma.done [#allocation6], 128
    $region21: #{tpu_custom_call.1} parent=1 // pred_fallthru
      _
    // Predicated region
    $region22: #{tpu_custom_call.1} parent=1 // pred_check
      _
    $region23: #{tpu_custom_call.1} parent=1 // pred_check_branch
      %50 = sbr.rel (0) target = $region25
    $region24: #{tpu_custom_call.1} parent=1 // pred_region
      %51 = dma.done [#allocation6], 256
    $region25: #{tpu_custom_call.1} parent=1 // pred_fallthru
      _
    %v52 = vld [vmem:[#allocation7] sm:$0xff]
    %v53 = vld [vmem:[#allocation7 + $0x8] sm:$0xff]
    %v54 = vld [vmem:[#allocation2] sm:$0xff]
    %v55 = vld [vmem:[#allocation5] sm:$0xff]
    %56 = vrot.lane.b32.xlu0 %v52, 127
    %v57 = vpop.permute.xlu0 %56
    %58 = vrot.lane.b32.xlu0 %v53, 127
    %v59 = vpop.permute.xlu0 %58
    %60 = vrot.lane.b32.xlu0 %v52, 1
    %v61 = vpop.permute.xlu0 %60
    %62 = vrot.lane.b32.xlu0 %v53, 1
    %v63 = vpop.permute.xlu0 %62
    %v64 = vlaneseq
    %v65 = vand.u32 %v64, 127
    %v66 = vand.u32 %v65, 1
    %vm67 = vcmp.eq.s32.totalorder %v66, 0
    %v68 = vsel %vm67, %v57, %v61
    %v69 = vsel %vm67, %v59, %v63
    %v70 = vmul.f32 %v52, %v54
    %v71 = vmul.f32 %v53, %v54
    %v72 = vmul.f32 %v68, %v55
    %v73 = vmul.f32 %v69, %v55
    %v74 = vadd.f32 %v70, %v72
    %v75 = vadd.f32 %v71, %v73
    %76 = vst [vmem:[#allocation8] sm:$0xff] %v74
    %77 = vst [vmem:[#allocation8 + $0x8] sm:$0xff] %v75
    // Predicated region
    $region26: #{tpu_custom_call.1} parent=1 // pred_check
      _
    $region27: #{tpu_custom_call.1} parent=1 // pred_check_branch
      %79 = sbr.rel (0) target = $region29
    $region28: #{tpu_custom_call.1} parent=1 // pred_region
      %s81 = ssub.s32 256, 256
      %82 = vsyncadd [#allocation4], %s81
      %s83 = sshll.u32 [#allocation8], 4
      %s84 = int_to_ptr.vmem [resolvable:$true] %s83
      %89 = dma.vmem_to_hbm [thread:$0]  %s84, 256, %s3, [#allocation4], 128, 128, 8
    $region29: #{tpu_custom_call.1} parent=1 // pred_fallthru
      _
    // Predicated region
    $region30: #{tpu_custom_call.1} parent=1 // pred_check
      _
    $region31: #{tpu_custom_call.1} parent=1 // pred_check_branch
      %91 = sbr.rel (0) target = $region33
    $region32: #{tpu_custom_call.1} parent=1 // pred_region
      %92 = dma.done [#allocation4], 256
    $region33: #{tpu_custom_call.1} parent=1 // pred_fallthru
      _
    %93 = vsyncpa [#allocation3], 1
    %94 = vsyncpa [#allocation6], 1
    %95 = vsyncpa [#allocation4], 1

</llo_original>
